<compile_context>
chip_gen: v7x
topology: tpu7x:2x2x1
jax: 0.10.0
libtpu: 0.0.40
codegen_flags: <defaults>
</compile_context>

<pallas_src>
import jax
import jax.numpy as jnp
from jax.experimental import pallas as pl
from jax.experimental.pallas import tpu as pltpu


# ----------------------------- configuration -----------------------------
B = 2        # batch
N = 8        # number of leads
T = 64       # signal length
D = 32       # cfg.feature_dim
H = 64       # cfg.deepsets.hidden_dim
C = 5        # cfg.num_classes
CLS_H = 32   # cfg.classifier.layers[0].out_size  (classifier: 2D -> 32 -> C)

LANE = 128   # TPU lane width; classifier output padded to this many lanes.
ALIGN = 16   # row alignment inside the packed weight slab (bf16-safe).


# ------------------------------- kernel ----------------------------------
def _make_kernel(n_leads, dims, w_off, b_off, mxu_dtype):
    """Build the kernel body with all static sizes / slab offsets closed over."""
    t, d, h, cls_h, cpad = (dims[k] for k in ("T", "D", "H", "CLS_H", "CPAD"))

    def kernel(x_ref, w_ref, b_ref, out_ref):
        m = x_ref.shape[0]              # rows in this block = bblk * n_leads
        bblk = m // n_leads

        def dot(a, w):
            return jnp.dot(a.astype(mxu_dtype), w,
                           preferred_element_type=jnp.float32)

        def W(name, rows, cols):        # static view into the weight slab
            r0 = w_off[name]
            return w_ref[r0:r0 + rows, :cols]

        def bias(name, cols):           # static view into the bias slab (f32)
            r0 = b_off[name]
            return b_ref[r0:r0 + 1, :cols]

        x = x_ref[...]                                             # (M, T)

        # Encoder: per-lead linear projection T -> D.
        # TODO(synk): get_encoder(cfg.encoder.name) architecture is not given
        # in the reference source; a per-lead Linear(T, D) is used here.
        lf = dot(x, W("enc", t, d)) + bias("enc", d)               # (M, D)

        # Fused lf matmul: [phi layer-0 | classifier local half] in one push.
        y = dot(lf, W("lf", d, h + cls_h))                         # (M, H+CLS_H)
        hid = jnp.maximum(y[:, :h] + bias("p1", h), 0.0)           # (M, H)
        loc = y[:, h:h + cls_h]                                    # (M, CLS_H)

        # DeepSets phi layer-1.
        hid = jnp.maximum(dot(hid, W("p2", h, h)) + bias("p2", h), 0.0)

        # Permutation-invariant pooling over leads (mean, mask=None).
        pooled = jnp.mean(hid.reshape(bblk, n_leads, h), axis=1)   # (Bblk, H)

        # rho layer-0; rho layer-1 is folded into W("rg") = w_r2 @ w_c1_bot,
        # so glb == (rho(pooled)) @ w_c1_bot exactly (two linears, no ReLU
        # between them in the reference).
        r = jnp.maximum(dot(pooled, W("r1", h, h)) + bias("r1", h), 0.0)
        glb = dot(r, W("rg", h, cls_h)) + bias("rg", cls_h)        # (Bblk, CLS_H)

        # classifier layer-0: relu(lf @ w_c1_top + ctx @ w_c1_bot + b_c1),
        # ctx broadcast over leads.
        c1 = loc.reshape(bblk, n_leads, cls_h) + glb[:, None, :] + bias("c1", cls_h)
        c1 = jnp.maximum(c1, 0.0).reshape(m, cls_h)                # (M, CLS_H)

        # Classifier head, lane-dense (padded to CPAD lanes; sliced in wrapper).
        out_ref[...] = dot(c1, W("c2", cls_h, cpad)) + bias("c2", cpad)

    return kernel


# --------------------------- parameter packing -----------------------------
def pack_params(params, mxu_dtype=jnp.float32):
    """Pack all weights into one padded slab and all biases into another.

    Done ONCE (outside jit): precomputes the concat-as-split-matmul weights,
    folds the rho output layer into the classifier context half, pads the
    classifier head to 128 lanes, and (optionally) casts matmul operands to
    bf16 for v6e/v7x MXUs.
    """
    t, d = params["w_enc"].shape
    h = params["w_p1"].shape[1]
    cls_h = params["w_c1"].shape[1]
    c = params["w_c2"].shape[1]
    cpad = max(LANE, -(-c // LANE) * LANE)

    w_c1_top = params["w_c1"][:d, :]
    w_c1_bot = params["w_c1"][d:, :]
    # Fused lf weight: [phi layer-0 | classifier local half].
    w_lf = jnp.concatenate([params["w_p1"], w_c1_top], axis=1)      # (D, H+CLS_H)
    # Fold rho layer-1 into the classifier "context" half (both linear).
    w_rg = params["w_r2"] @ w_c1_bot                                # (H, CLS_H)
    b_rg = params["b_r2"] @ w_c1_bot                                # (1, CLS_H)
    # Lane-dense classifier head.
    w_c2_pad = jnp.zeros((cls_h, cpad), jnp.float32).at[:, :c].set(params["w_c2"])
    b_c2_pad = jnp.zeros((1, cpad), jnp.float32).at[:, :c].set(params["b_c2"])

    weights = [("enc", params["w_enc"]), ("lf", w_lf), ("p2", params["w_p2"]),
               ("r1", params["w_r1"]), ("rg", w_rg), ("c2", w_c2_pad)]
    biases = [("enc", params["b_enc"]), ("p1", params["b_p1"]),
              ("p2", params["b_p2"]), ("r1", params["b_r1"]),
              ("rg", b_rg), ("c1", params["b_c1"]), ("c2", b_c2_pad)]

    w_off, row = {}, 0
    for name, w in weights:
        w_off[name] = row
        row += -(-w.shape[0] // ALIGN) * ALIGN
    w_slab = jnp.zeros((row, LANE), jnp.float32)
    for name, w in weights:
        w_slab = w_slab.at[w_off[name]:w_off[name] + w.shape[0], :w.shape[1]].set(w)
    w_slab = w_slab.astype(mxu_dtype)

    b_off = {}
    b_slab = jnp.zeros((-(-len(biases) // 8) * 8, LANE), jnp.float32)
    for i, (name, b) in enumerate(biases):
        b_off[name] = i
        b_slab = b_slab.at[i, :b.shape[1]].set(b[0])

    dims = {"T": t, "D": d, "H": h, "CLS_H": cls_h, "C": c, "CPAD": cpad}
    return w_slab, b_slab, w_off, b_off, dims


# ------------------------------- wrapper ----------------------------------
def _min_parallel_steps():
    """v7x has 2 TensorCores per chip; keep >= 2 parallel grid steps there."""
    try:
        if "v7" in jax.devices()[0].device_kind.lower():
            return 2
    except Exception:  # pragma: no cover - conservative fallback
        pass
    return 1


def _pick_batch_block(batch, n_leads, target_rows=1024, min_steps=1):
    """Largest divisor of `batch` with bblk*N <= target_rows (fills MXU M dim);
    optionally shrink so the grid has at least `min_steps` parallel steps."""
    bblk = max(1, min(batch, target_rows // max(1, n_leads)))
    while batch % bblk:
        bblk -= 1
    if min_steps > 1 and batch // bblk < min_steps:
        cand = bblk
        while cand > 1 and (batch % cand or batch // cand < min_steps):
            cand -= 1
        if cand >= 1 and batch % cand == 0 and batch // cand >= min_steps:
            bblk = cand
    return bblk


def build_siglab_forward(params, *, mxu_dtype=jnp.float32, target_rows=1024):
    """Pack params once and return (jitted forward fn, packed param slabs)."""
    w_slab, b_slab, w_off, b_off, dims = pack_params(params, mxu_dtype)
    t, c, cpad = dims["T"], dims["C"], dims["CPAD"]
    min_steps = _min_parallel_steps()

    @jax.jit
    def forward(signals, w_slab, b_slab):
        bq, nq, tq = signals.shape
        assert tq == t
        x2d = signals.reshape(bq * nq, tq)                    # lane-dense 2-D

        bblk = _pick_batch_block(bq, nq, target_rows=target_rows,
                                 min_steps=min_steps)
        rows = bblk * nq
        grid = bq // bblk
        kernel = _make_kernel(nq, dims, w_off, b_off, mxu_dtype)

        padded = pl.pallas_call(
            kernel,
            out_shape=jax.ShapeDtypeStruct((bq * nq, cpad), jnp.float32),
            grid_spec=pltpu.PrefetchScalarGridSpec(
                num_scalar_prefetch=0,
                grid=(grid,),
                in_specs=[
                    pl.BlockSpec((rows, tq), lambda b: (b, 0)),
                    # Constant block index -> parameter slabs DMA'd once and
                    # kept VMEM-resident across the grid.
                    pl.BlockSpec(w_slab.shape, lambda b: (0, 0)),
                    pl.BlockSpec(b_slab.shape, lambda b: (0, 0)),
                ],
                out_specs=pl.BlockSpec((rows, cpad), lambda b: (b, 0)),
            ),
            compiler_params=pltpu.CompilerParams(
                dimension_semantics=("parallel",)),
        )(x2d, w_slab, b_slab)

        # Slice back to the real class count; fuses under jit.
        return padded[:, :c].reshape(bq, nq, c)

    return forward, (w_slab, b_slab)


# --------------------------- parameter creation ----------------------------
def _linear_init(key, fan_in, fan_out):
    """PyTorch-style nn.Linear init: U(-1/sqrt(fan_in), 1/sqrt(fan_in))."""
    kw, kb = jax.random.split(key)
    bound = 1.0 / jnp.sqrt(jnp.float32(fan_in))
    w = jax.random.uniform(kw, (fan_in, fan_out), jnp.float32, -bound, bound)
    b = jax.random.uniform(kb, (1, fan_out), jnp.float32, -bound, bound)
    return w, b


def make_params(key):
    keys = jax.random.split(key, 7)
    p = {}
    p["w_enc"], p["b_enc"] = _linear_init(keys[0], T, D)       # encoder
    p["w_p1"], p["b_p1"] = _linear_init(keys[1], D, H)         # deepsets phi 1
    p["w_p2"], p["b_p2"] = _linear_init(keys[2], H, H)         # deepsets phi 2
    p["w_r1"], p["b_r1"] = _linear_init(keys[3], H, H)         # deepsets rho 1
    p["w_r2"], p["b_r2"] = _linear_init(keys[4], H, D)         # deepsets rho 2
    p["w_c1"], p["b_c1"] = _linear_init(keys[5], 2 * D, CLS_H) # classifier l0
    p["w_c2"], p["b_c2"] = _linear_init(keys[6], CLS_H, C)     # classifier out
    return p
    # TODO(synk): the module's self.init_head is defined but unused in the
    # reference forward(), so it is intentionally not implemented here.


# ----------------------------- pure-JAX reference ---------------------------
def reference_forward(signals, p):
    lf = signals @ p["w_enc"] + p["b_enc"]
    h = jax.nn.relu(lf @ p["w_p1"] + p["b_p1"])
    h = jax.nn.relu(h @ p["w_p2"] + p["b_p2"])
    pooled = h.mean(axis=1)                                   # (B, H)
    r = jax.nn.relu(pooled @ p["w_r1"] + p["b_r1"])
    ctx = r @ p["w_r2"] + p["b_r2"]                           # (B, D)
    feat = jnp.concatenate(
        [lf, jnp.broadcast_to(ctx[:, None, :], lf.shape)], axis=-1)
    c1 = jax.nn.relu(feat @ p["w_c1"] + p["b_c1"])
    return c1 @ p["w_c2"] + p["b_c2"]


# --------------------------------- main -------------------------------------
if __name__ == "__main__":
    key = jax.random.PRNGKey(0)
    k_sig, k_par = jax.random.split(key)

    signals = jax.random.normal(k_sig, (B, N, T), jnp.float32)
    params = make_params(k_par)

    # f32 validation configuration.  For v6e/v7x deployment use
    # build_siglab_forward(params, mxu_dtype=jnp.bfloat16) (looser tolerance).
    forward, packed = build_siglab_forward(params)
    logits = jax.block_until_ready(forward(signals, *packed))

    ref = reference_forward(signals, params)
    assert logits.shape == (B, N, C), logits.shape
    assert jnp.allclose(logits, ref, atol=1e-4, rtol=1e-4), (
        float(jnp.max(jnp.abs(logits - ref))))

    print("KERNEL_OK")
</pallas_src>

<mosaic_0001>
module attributes {stable_mosaic.version = 11 : i64} {
  func.func @kernel(%arg0: i32, %arg1: memref<16x64xf32, #tpu.memory_space<vmem>>, %arg2: memref<320x128xf32, #tpu.memory_space<vmem>>, %arg3: memref<8x128xf32, #tpu.memory_space<vmem>>, %arg4: memref<16x128xf32, #tpu.memory_space<vmem>>) attributes {dimension_semantics = [#tpu.dimension_semantics<parallel>], iteration_bounds = array<i64: 1>, scalar_prefetch = 0 : i64, scratch_operands = 0 : i64, tpu.core_type = #tpu.core_type<tc>, window_params = [{transform_indices = @transform_0, window_bounds = array<i64: 16, 64>}, {pipeline_mode = #tpu.pipeline_mode<synchronous>, transform_indices = @transform_1, window_bounds = array<i64: 320, 128>}, {pipeline_mode = #tpu.pipeline_mode<synchronous>, transform_indices = @transform_2, window_bounds = array<i64: 8, 128>}, {transform_indices = @transform_3, window_bounds = array<i64: 16, 128>}]} {
    %c0 = arith.constant 0 : index
    %c0_0 = arith.constant 0 : index
    %0 = vector.load %arg1[%c0, %c0_0] : memref<16x64xf32, #tpu.memory_space<vmem>>, vector<16x64xf32>
    %c0_1 = arith.constant 0 : index
    %c0_2 = arith.constant 0 : index
    %1 = vector.load %arg2[%c0_1, %c0_2] : memref<320x128xf32, #tpu.memory_space<vmem>>, vector<64x32xf32>
    %cst = arith.constant dense<0.000000e+00> : vector<16x32xf32>
    %2 = tpu.matmul %0, %1, %cst {dimension_numbers = #tpu.dot_dimension_numbers<[1], [0], [0], [1], [0, 0, 1, 1], [], []>} : vector<16x64xf32>, vector<64x32xf32>, vector<16x32xf32> -> vector<16x32xf32>
    %c0_3 = arith.constant 0 : index
    %c0_4 = arith.constant 0 : index
    %3 = vector.load %arg3[%c0_3, %c0_4] : memref<8x128xf32, #tpu.memory_space<vmem>>, vector<1x32xf32>
    %4 = vector.broadcast %3 : vector<1x32xf32> to vector<16x32xf32>
    %5 = arith.addf %2, %4 : vector<16x32xf32>
    %c64 = arith.constant 64 : index
    %c0_5 = arith.constant 0 : index
    %6 = vector.load %arg2[%c64, %c0_5] : memref<320x128xf32, #tpu.memory_space<vmem>>, vector<32x96xf32>
    %cst_6 = arith.constant dense<0.000000e+00> : vector<16x96xf32>
    %7 = tpu.matmul %5, %6, %cst_6 {dimension_numbers = #tpu.dot_dimension_numbers<[1], [0], [0], [1], [0, 0, 1, 1], [], []>} : vector<16x32xf32>, vector<32x96xf32>, vector<16x96xf32> -> vector<16x96xf32>
    %8 = vector.extract_strided_slice %7 {offsets = [0, 0], sizes = [16, 64], strides = [1, 1]} : vector<16x96xf32> to vector<16x64xf32>
    %c1 = arith.constant 1 : index
    %c0_7 = arith.constant 0 : index
    %9 = vector.load %arg3[%c1, %c0_7] : memref<8x128xf32, #tpu.memory_space<vmem>>, vector<1x64xf32>
    %10 = vector.broadcast %9 : vector<1x64xf32> to vector<16x64xf32>
    %11 = arith.addf %8, %10 : vector<16x64xf32>
    %cst_8 = arith.constant 0.000000e+00 : f32
    %12 = vector.broadcast %cst_8 : f32 to vector<16x64xf32>
    %13 = arith.maximumf %11, %12 : vector<16x64xf32>
    %14 = vector.extract_strided_slice %7 {offsets = [0, 64], sizes = [16, 32], strides = [1, 1]} : vector<16x96xf32> to vector<16x32xf32>
    %c96 = arith.constant 96 : index
    %c0_9 = arith.constant 0 : index
    %15 = vector.load %arg2[%c96, %c0_9] : memref<320x128xf32, #tpu.memory_space<vmem>>, vector<64x64xf32>
    %cst_10 = arith.constant dense<0.000000e+00> : vector<16x64xf32>
    %16 = tpu.matmul %13, %15, %cst_10 {dimension_numbers = #tpu.dot_dimension_numbers<[1], [0], [0], [1], [0, 0, 1, 1], [], []>} : vector<16x64xf32>, vector<64x64xf32>, vector<16x64xf32> -> vector<16x64xf32>
    %c2 = arith.constant 2 : index
    %c0_11 = arith.constant 0 : index
    %17 = vector.load %arg3[%c2, %c0_11] : memref<8x128xf32, #tpu.memory_space<vmem>>, vector<1x64xf32>
    %18 = vector.broadcast %17 : vector<1x64xf32> to vector<16x64xf32>
    %19 = arith.addf %16, %18 : vector<16x64xf32>
    %cst_12 = arith.constant 0.000000e+00 : f32
    %20 = vector.broadcast %cst_12 : f32 to vector<16x64xf32>
    %21 = arith.maximumf %19, %20 : vector<16x64xf32>
    %22 = vector.shape_cast %21 : vector<16x64xf32> to vector<2x8x64xf32>
    %cst_13 = arith.constant dense<0.000000e+00> : vector<2x64xf32>
    %23 = vector.multi_reduction <add>, %22, %cst_13 [1] : vector<2x8x64xf32> to vector<2x64xf32>
    %cst_14 = arith.constant 8.000000e+00 : f32
    %24 = vector.broadcast %cst_14 : f32 to vector<2x64xf32>
    %25 = arith.divf %23, %24 : vector<2x64xf32>
    %c160 = arith.constant 160 : index
    %c0_15 = arith.constant 0 : index
    %26 = vector.load %arg2[%c160, %c0_15] : memref<320x128xf32, #tpu.memory_space<vmem>>, vector<64x64xf32>
    %cst_16 = arith.constant dense<0.000000e+00> : vector<2x64xf32>
    %27 = tpu.matmul %25, %26, %cst_16 {dimension_numbers = #tpu.dot_dimension_numbers<[1], [0], [0], [1], [0, 0, 1, 1], [], []>} : vector<2x64xf32>, vector<64x64xf32>, vector<2x64xf32> -> vector<2x64xf32>
    %c3 = arith.constant 3 : index
    %c0_17 = arith.constant 0 : index
    %28 = vector.load %arg3[%c3, %c0_17] : memref<8x128xf32, #tpu.memory_space<vmem>>, vector<1x64xf32>
    %29 = vector.broadcast %28 : vector<1x64xf32> to vector<2x64xf32>
    %30 = arith.addf %27, %29 : vector<2x64xf32>
    %cst_18 = arith.constant 0.000000e+00 : f32
    %31 = vector.broadcast %cst_18 : f32 to vector<2x64xf32>
    %32 = arith.maximumf %30, %31 : vector<2x64xf32>
    %c224 = arith.constant 224 : index
    %c0_19 = arith.constant 0 : index
    %33 = vector.load %arg2[%c224, %c0_19] : memref<320x128xf32, #tpu.memory_space<vmem>>, vector<64x32xf32>
    %cst_20 = arith.constant dense<0.000000e+00> : vector<2x32xf32>
    %34 = tpu.matmul %32, %33, %cst_20 {dimension_numbers = #tpu.dot_dimension_numbers<[1], [0], [0], [1], [0, 0, 1, 1], [], []>} : vector<2x64xf32>, vector<64x32xf32>, vector<2x32xf32> -> vector<2x32xf32>
    %c4 = arith.constant 4 : index
    %c0_21 = arith.constant 0 : index
    %35 = vector.load %arg3[%c4, %c0_21] : memref<8x128xf32, #tpu.memory_space<vmem>>, vector<1x32xf32>
    %36 = vector.broadcast %35 : vector<1x32xf32> to vector<2x32xf32>
    %37 = arith.addf %34, %36 : vector<2x32xf32>
    %38 = vector.shape_cast %14 : vector<16x32xf32> to vector<2x8x32xf32>
    %39 = vector.shape_cast %37 : vector<2x32xf32> to vector<2x1x32xf32>
    %40 = vector.broadcast %39 : vector<2x1x32xf32> to vector<2x8x32xf32>
    %41 = arith.addf %38, %40 : vector<2x8x32xf32>
    %c5 = arith.constant 5 : index
    %c0_22 = arith.constant 0 : index
    %42 = vector.load %arg3[%c5, %c0_22] : memref<8x128xf32, #tpu.memory_space<vmem>>, vector<1x32xf32>
    %43 = vector.shape_cast %42 : vector<1x32xf32> to vector<1x1x32xf32>
    %44 = vector.broadcast %43 : vector<1x1x32xf32> to vector<2x8x32xf32>
    %45 = arith.addf %41, %44 : vector<2x8x32xf32>
    %cst_23 = arith.constant 0.000000e+00 : f32
    %46 = vector.broadcast %cst_23 : f32 to vector<2x8x32xf32>
    %47 = arith.maximumf %45, %46 : vector<2x8x32xf32>
    %48 = vector.shape_cast %47 : vector<2x8x32xf32> to vector<16x32xf32>
    %c288 = arith.constant 288 : index
    %c0_24 = arith.constant 0 : index
    %49 = vector.load %arg2[%c288, %c0_24] : memref<320x128xf32, #tpu.memory_space<vmem>>, vector<32x128xf32>
    %cst_25 = arith.constant dense<0.000000e+00> : vector<16x128xf32>
    %50 = tpu.matmul %48, %49, %cst_25 {dimension_numbers = #tpu.dot_dimension_numbers<[1], [0], [0], [1], [0, 0, 1, 1], [], []>} : vector<16x32xf32>, vector<32x128xf32>, vector<16x128xf32> -> vector<16x128xf32>
    %c6 = arith.constant 6 : index
    %c0_26 = arith.constant 0 : index
    %51 = vector.load %arg3[%c6, %c0_26] : memref<8x128xf32, #tpu.memory_space<vmem>>, vector<1x128xf32>
    %52 = vector.broadcast %51 : vector<1x128xf32> to vector<16x128xf32>
    %53 = arith.addf %50, %52 : vector<16x128xf32>
    %c0_27 = arith.constant 0 : index
    %c0_28 = arith.constant 0 : index
    %54 = vector.load %arg4[%c0_27, %c0_28] : memref<16x128xf32, #tpu.memory_space<vmem>>, vector<16x128xf32>
    tpu.vector_store %arg4[%c0_27, %c0_28], %53 {strides = array<i32>} : memref<16x128xf32, #tpu.memory_space<vmem>>, vector<16x128xf32>,
    return
  }
  func.func @transform_0(%arg0: i32) -> (i32, i32) {
    %c0_i32 = arith.constant 0 : i32
    %c0_i32_0 = arith.constant 0 : i32
    return %arg0, %c0_i32 : i32, i32
  }
  func.func @transform_1(%arg0: i32) -> (i32, i32) {
    %c0_i32 = arith.constant 0 : i32
    %c0_i32_0 = arith.constant 0 : i32
    %c0_i32_1 = arith.constant 0 : i32
    return %c0_i32, %c0_i32_0 : i32, i32
  }
  func.func @transform_2(%arg0: i32) -> (i32, i32) {
    %c0_i32 = arith.constant 0 : i32
    %c0_i32_0 = arith.constant 0 : i32
    %c0_i32_1 = arith.constant 0 : i32
    return %c0_i32, %c0_i32_0 : i32, i32
  }
  func.func @transform_3(%arg0: i32) -> (i32, i32) {
    %c0_i32 = arith.constant 0 : i32
    %c0_i32_0 = arith.constant 0 : i32
    return %arg0, %c0_i32 : i32, i32
  }
}

</mosaic_0001>

<llo_original>
// kernel: forward.1
$region0: #{forward.1}
  #allocation0 [shape = 'u32[]', space=smem, size = 0x4, offset = 0x4, fixed_abs, tag = 'smem constant byte address 0x4 - core index']
  #allocation1 [shape = 'u32[144,128]{1,0:T(1,128)}', space=vmem, size = 0x12000, scoped, tag = 'internal scratch']
  %s0 = inlined_call_operand.hbm [shape: f32[16,64], index: 0, kind: input, shape index: {}]
  %s1 = inlined_call_operand.hbm [shape: f32[320,128], index: 1, kind: input, shape index: {}]
  %s2 = inlined_call_operand.vmem [shape: f32[8,128], index: 2, kind: input, shape index: {}]
  %s3 = inlined_call_operand.vmem [shape: f32[16,128], index: 3, kind: output, shape index: {}]
  %s4 = sld [smem:[#allocation0]]
  $region30: #{forward.1} parent=0
    _
  %s6 = ssub.s32 1, %s4
  %s7 = scalar_select 0, %s6, %s4
  $region1: #{forward.1} parent=0
    #allocation2 [shape = 'u8[8192]{0}', space=vmem, size = 0x2000, scoped, tag = 'input window, operand 0, single buffered']
    #allocation3 [shape = 's32[1]{0}', space=sflag, size = 0x4, scoped, tag = 'scoped memory for forward.1']
    #allocation4 [shape = 'u8[163840]{0}', space=vmem, size = 0x28000, scoped, tag = 'input window, operand 1, single buffered']
    #allocation5 [shape = 's32[1]{0}', space=sflag, size = 0x4, scoped, tag = 'scoped memory for forward.1']
    %8 = vsyncpa [#allocation3], 0
    %9 = vsyncpa [#allocation5], 0
    // Predicated region
    $region2: #{forward.1} parent=1 // pred_check
      _
    $region3: #{forward.1} parent=1 // pred_check_branch
      %11 = sbr.rel (0) target = $region5
    $region4: #{forward.1} parent=1 // pred_region
      %s13 = ssub.s32 256, 256
      %14 = vsyncadd [#allocation3], %s13
      %s15 = sshll.u32 [#allocation2], 4
      %s16 = int_to_ptr.vmem [resolvable:$true] %s15
      %21 = dma.hbm_to_vmem [thread:$0]  %s0, 256, %s16, [#allocation3], 128, 128, 8
    $region5: #{forward.1} parent=1 // pred_fallthru
      _
    // Predicated region
    $region6: #{forward.1} parent=1 // pred_check
      _
    $region7: #{forward.1} parent=1 // pred_check_branch
      %23 = sbr.rel (0) target = $region9
    $region8: #{forward.1} parent=1 // pred_region
      %s25 = ssub.s32 5120, 5120
      %26 = vsyncadd [#allocation5], %s25
      %s27 = sshll.u32 [#allocation4], 4
      %s28 = int_to_ptr.vmem [resolvable:$true] %s27
      %33 = dma.hbm_to_vmem [thread:$0]  %s1, 5120, %s28, [#allocation5], 128, 128, 8
    $region9: #{forward.1} parent=1 // pred_fallthru
      _
    // Predicated region
    $region10: #{forward.1} parent=1 // pred_check
      _
    $region11: #{forward.1} parent=1 // pred_check_branch
      %35 = sbr.rel (0) target = $region13
    $region12: #{forward.1} parent=1 // pred_region
      _
    $region13: #{forward.1} parent=1 // pred_fallthru
      _
    // Predicated region
    $region14: #{forward.1} parent=1 // pred_check
      _
    $region15: #{forward.1} parent=1 // pred_check_branch
      %37 = sbr.rel (0) target = $region17
    $region16: #{forward.1} parent=1 // pred_region
      %38 = dma.done [#allocation3], 256
    $region17: #{forward.1} parent=1 // pred_fallthru
      _
    // Predicated region
    $region18: #{forward.1} parent=1 // pred_check
      _
    $region19: #{forward.1} parent=1 // pred_check_branch
      %40 = sbr.rel (0) target = $region21
    $region20: #{forward.1} parent=1 // pred_region
      %41 = dma.done [#allocation5], 5120
    $region21: #{forward.1} parent=1 // pred_fallthru
      _
    %v42 = vld [vmem:[#allocation2] sm:$0xff]
    %v43 = vld [vmem:[#allocation2 + $0x8] sm:$0xff]
    %v44 = vld [vmem:[#allocation4] sm:$0xff]
    %v45 = vld [vmem:[#allocation4 + $0x8] sm:$0xff]
    %v46 = vld [vmem:[#allocation4 + $0x10] sm:$0xff]
    %v47 = vld [vmem:[#allocation4 + $0x18] sm:$0xff]
    %v48 = vld [vmem:[#allocation4 + $0x20] sm:$0xff]
    %v49 = vld [vmem:[#allocation4 + $0x28] sm:$0xff]
    %v50 = vld [vmem:[#allocation4 + $0x30] sm:$0xff]
    %v51 = vld [vmem:[#allocation4 + $0x38] sm:$0xff]
    %v52 = vld [vmem:[%s2] sm:$0x1]
    %v53 = vlaneseq
    %v54 = vshrl.u32 %v53, 7
    %v55 = vsub.s32 0, %v54
    %v56 = vrot.slane %v52, %v55
    %vm57 = vcmask 523264
    %v59 = vsel %vm57, %v42, 0
    %v62 = vsel %vm57, %v43, 0
    %64 = vmatprep.subr.mxu0 0.0
    %65 = vmatpush1.msra.mxu0 %v44
    %66 = vmatprep.subr.mxu0 0.0
    %67 = vmatpush1.msra.mxu0 %v45
    %68 = vmatprep.subr.mxu0 0.0
    %69 = vmatpush1.msra.mxu0 %v46
    %70 = vmatprep.subr.mxu0 0.0
    %71 = vmatpush1.msra.mxu0 %v47
    %72 = vmatprep.subr.mxu0 0.0
    %73 = vmatpush1.msra.mxu0 %v48
    %74 = vmatprep.subr.mxu0 0.0
    %75 = vmatpush1.msra.mxu0 %v49
    %76 = vmatprep.subr.mxu0 0.0
    %77 = vmatpush1.msra.mxu0 %v50
    %78 = vmatprep.subr.mxu0 0.0
    %79 = vmatpush1.msra.mxu0 %v51
    %80 = vmatprep.subr.mxu0 0.0
    %81 = vmatpush1.msra.mxu0 0.0
    %82 = vmatprep.subr.mxu0 0.0
    %83 = vmatpush1.msra.mxu0 0.0
    %84 = vmatprep.subr.mxu0 0.0
    %85 = vmatpush1.msra.mxu0 0.0
    %86 = vmatprep.subr.mxu0 0.0
    %87 = vmatpush1.msra.mxu0 0.0
    %88 = vmatprep.subr.mxu0 0.0
    %89 = vmatpush1.msra.mxu0 0.0
    %90 = vmatprep.subr.mxu0 0.0
    %91 = vmatpush1.msra.mxu0 0.0
    %92 = vmatprep.subr.mxu0 0.0
    %93 = vmatpush1.msra.mxu0 0.0
    %94 = vmatprep.subr.mxu0 0.0
    %95 = vmatpush1.msra.mxu0 0.0
    %96 = vmatprep.subr.mxu0 0.0
    %97 = vmatpush1.msra.mxu0 0.0
    %98 = vmatprep.subr.mxu0 0.0
    %99 = vmatpush1.msra.mxu0 0.0
    %100 = vmatprep.subr.mxu0 0.0
    %101 = vmatpush1.msra.mxu0 0.0
    %102 = vmatprep.subr.mxu0 0.0
    %103 = vmatpush1.msra.mxu0 0.0
    %104 = vmatprep.subr.mxu0 0.0
    %105 = vmatpush1.msra.mxu0 0.0
    %106 = vmatprep.subr.mxu0 0.0
    %107 = vmatpush1.msra.mxu0 0.0
    %108 = vmatprep.subr.mxu0 0.0
    %109 = vmatpush1.msra.mxu0 0.0
    %110 = vmatprep.subr.mxu0 0.0
    %111 = vmatpush1.msra.mxu0 0.0
    %112 = vmatprep.subr.mxu0 0.0
    %113 = vmatpush1.msra.mxu0 0.0
    %114 = vmatprep.subr.mxu0 0.0
    %115 = vmatpush1.msra.mxu0 0.0
    %116 = vmatprep.subr.mxu0 0.0
    %117 = vmatpush1.msra.mxu0 0.0
    %118 = vmatprep.subr.mxu0 0.0
    %119 = vmatpush1.msra.mxu0 0.0
    %120 = vmatprep.subr.mxu0 0.0
    %121 = vmatpush1.msra.mxu0 0.0
    %122 = vmatprep.subr.mxu0 0.0
    %123 = vmatpush1.msra.mxu0 0.0
    %124 = vmatprep.subr.mxu0 0.0
    %125 = vmatpush1.msra.mxu0 0.0
    %126 = vmatprep.subr.mxu0 0.0
    %127 = vmatpush1.msra.mxu0 0.0
    %128 = vmatprep.mubr.f32.mxu0 0.0
    %129 = vmatmul.mubr.f32.gmra.mrb[0].mxu0 %v59
    %v130 = vpop.f32.mrb[0].mxu0
    %v131 = vadd.f32 %v56, %v130
    %v132 = vpop.f32.mrb[0].mxu0
    %133 = vmatprep.mubr.f32.mxu0 0.0
    %134 = vmatmul.mubr.f32.gmra.mrb[0].mxu0 %v62
    %v135 = vpop.f32.mrb[0].mxu0
    %v136 = vadd.f32 %v56, %v135
    %v137 = vpop.f32.mrb[0].mxu0
    %138 = vdwg.mxu0
    %v139 = vld [vmem:[#allocation4 + $0x40] sm:$0xff]
    %v140 = vld [vmem:[#allocation4 + $0x48] sm:$0xff]
    %v141 = vld [vmem:[#allocation4 + $0x50] sm:$0xff]
    %v142 = vld [vmem:[#allocation4 + $0x58] sm:$0xff]
    %vm143 = vcmask 261120
    %v145 = vsel %vm143, %v131, 0
    %v148 = vsel %vm143, %v136, 0
    %150 = vmatprep.subr.mxu0 0.0
    %151 = vmatpush1.msra.mxu0 %v139
    %152 = vmatprep.subr.mxu0 0.0
    %153 = vmatpush1.msra.mxu0 %v140
    %154 = vmatprep.subr.mxu0 0.0
    %155 = vmatpush1.msra.mxu0 %v141
    %156 = vmatprep.subr.mxu0 0.0
    %157 = vmatpush1.msra.mxu0 %v142
    %158 = vmatprep.subr.mxu0 0.0
    %159 = vmatpush1.msra.mxu0 0.0
    %160 = vmatprep.subr.mxu0 0.0
    %161 = vmatpush1.msra.mxu0 0.0
    %162 = vmatprep.subr.mxu0 0.0
    %163 = vmatpush1.msra.mxu0 0.0
    %164 = vmatprep.subr.mxu0 0.0
    %165 = vmatpush1.msra.mxu0 0.0
    %166 = vmatprep.subr.mxu0 0.0
    %167 = vmatpush1.msra.mxu0 0.0
    %168 = vmatprep.subr.mxu0 0.0
    %169 = vmatpush1.msra.mxu0 0.0
    %170 = vmatprep.subr.mxu0 0.0
    %171 = vmatpush1.msra.mxu0 0.0
    %172 = vmatprep.subr.mxu0 0.0
    %173 = vmatpush1.msra.mxu0 0.0
    %174 = vmatprep.subr.mxu0 0.0
    %175 = vmatpush1.msra.mxu0 0.0
    %176 = vmatprep.subr.mxu0 0.0
    %177 = vmatpush1.msra.mxu0 0.0
    %178 = vmatprep.subr.mxu0 0.0
    %179 = vmatpush1.msra.mxu0 0.0
    %180 = vmatprep.subr.mxu0 0.0
    %181 = vmatpush1.msra.mxu0 0.0
    %182 = vmatprep.subr.mxu0 0.0
    %183 = vmatpush1.msra.mxu0 0.0
    %184 = vmatprep.subr.mxu0 0.0
    %185 = vmatpush1.msra.mxu0 0.0
    %186 = vmatprep.subr.mxu0 0.0
    %187 = vmatpush1.msra.mxu0 0.0
    %188 = vmatprep.subr.mxu0 0.0
    %189 = vmatpush1.msra.mxu0 0.0
    %190 = vmatprep.subr.mxu0 0.0
    %191 = vmatpush1.msra.mxu0 0.0
    %192 = vmatprep.subr.mxu0 0.0
    %193 = vmatpush1.msra.mxu0 0.0
    %194 = vmatprep.subr.mxu0 0.0
    %195 = vmatpush1.msra.mxu0 0.0
    %196 = vmatprep.subr.mxu0 0.0
    %197 = vmatpush1.msra.mxu0 0.0
    %198 = vmatprep.subr.mxu0 0.0
    %199 = vmatpush1.msra.mxu0 0.0
    %200 = vmatprep.subr.mxu0 0.0
    %201 = vmatpush1.msra.mxu0 0.0
    %202 = vmatprep.subr.mxu0 0.0
    %203 = vmatpush1.msra.mxu0 0.0
    %204 = vmatprep.subr.mxu0 0.0
    %205 = vmatpush1.msra.mxu0 0.0
    %206 = vmatprep.subr.mxu0 0.0
    %207 = vmatpush1.msra.mxu0 0.0
    %208 = vmatprep.subr.mxu0 0.0
    %209 = vmatpush1.msra.mxu0 0.0
    %210 = vmatprep.subr.mxu0 0.0
    %211 = vmatpush1.msra.mxu0 0.0
    %212 = vmatprep.subr.mxu0 0.0
    %213 = vmatpush1.msra.mxu0 0.0
    %214 = vmatprep.mubr.f32.mxu0 0.0
    %215 = vmatmul.mubr.f32.gmra.mrb[0].mxu0 %v145
    %v216 = vpop.f32.mrb[0].mxu0
    %v217 = vadd.f32 0.0, %v216
    %v218 = vpop.f32.mrb[0].mxu0
    %219 = vmatprep.mubr.f32.mxu0 0.0
    %220 = vmatmul.mubr.f32.gmra.mrb[0].mxu0 %v148
    %v221 = vpop.f32.mrb[0].mxu0
    %v222 = vadd.f32 0.0, %v221
    %v223 = vpop.f32.mrb[0].mxu0
    %224 = vdwg.mxu0
    %v225 = vld [vmem:[%s2 + $0x1] sm:$0x1]
    %v226 = vlaneseq
    %v227 = vshrl.u32 %v226, 7
    %v228 = vsub.s32 0, %v227
    %v229 = vrot.slane %v225, %v228
    %v230 = vadd.f32 %v217, %v229
    %v231 = vadd.f32 %v222, %v229
    %v232 = vmax.f32 %v230, 0.0
    %v233 = vmax.f32 %v231, 0.0
    %v234 = vld [vmem:[#allocation4 + $0x60] sm:$0xff]
    %v235 = vld [vmem:[#allocation4 + $0x68] sm:$0xff]
    %v236 = vld [vmem:[#allocation4 + $0x70] sm:$0xff]
    %v237 = vld [vmem:[#allocation4 + $0x78] sm:$0xff]
    %v238 = vld [vmem:[#allocation4 + $0x80] sm:$0xff]
    %v239 = vld [vmem:[#allocation4 + $0x88] sm:$0xff]
    %v240 = vld [vmem:[#allocation4 + $0x90] sm:$0xff]
    %v241 = vld [vmem:[#allocation4 + $0x98] sm:$0xff]
    %v242 = vld [vmem:[%s2 + $0x2] sm:$0x1]
    %v243 = vlaneseq
    %v244 = vshrl.u32 %v243, 7
    %v245 = vsub.s32 0, %v244
    %v246 = vrot.slane %v242, %v245
    %v248 = vsel %vm57, %v232, 0
    %v251 = vsel %vm57, %v233, 0
    %253 = vmatprep.subr.mxu0 0.0
    %254 = vmatpush1.msra.mxu0 %v234
    %255 = vmatprep.subr.mxu0 0.0
    %256 = vmatpush1.msra.mxu0 %v235
    %257 = vmatprep.subr.mxu0 0.0
    %258 = vmatpush1.msra.mxu0 %v236
    %259 = vmatprep.subr.mxu0 0.0
    %260 = vmatpush1.msra.mxu0 %v237
    %261 = vmatprep.subr.mxu0 0.0
    %262 = vmatpush1.msra.mxu0 %v238
    %263 = vmatprep.subr.mxu0 0.0
    %264 = vmatpush1.msra.mxu0 %v239
    %265 = vmatprep.subr.mxu0 0.0
    %266 = vmatpush1.msra.mxu0 %v240
    %267 = vmatprep.subr.mxu0 0.0
    %268 = vmatpush1.msra.mxu0 %v241
    %269 = vmatprep.subr.mxu0 0.0
    %270 = vmatpush1.msra.mxu0 0.0
    %271 = vmatprep.subr.mxu0 0.0
    %272 = vmatpush1.msra.mxu0 0.0
    %273 = vmatprep.subr.mxu0 0.0
    %274 = vmatpush1.msra.mxu0 0.0
    %275 = vmatprep.subr.mxu0 0.0
    %276 = vmatpush1.msra.mxu0 0.0
    %277 = vmatprep.subr.mxu0 0.0
    %278 = vmatpush1.msra.mxu0 0.0
    %279 = vmatprep.subr.mxu0 0.0
    %280 = vmatpush1.msra.mxu0 0.0
    %281 = vmatprep.subr.mxu0 0.0
    %282 = vmatpush1.msra.mxu0 0.0
    %283 = vmatprep.subr.mxu0 0.0
    %284 = vmatpush1.msra.mxu0 0.0
    %285 = vmatprep.subr.mxu0 0.0
    %286 = vmatpush1.msra.mxu0 0.0
    %287 = vmatprep.subr.mxu0 0.0
    %288 = vmatpush1.msra.mxu0 0.0
    %289 = vmatprep.subr.mxu0 0.0
    %290 = vmatpush1.msra.mxu0 0.0
    %291 = vmatprep.subr.mxu0 0.0
    %292 = vmatpush1.msra.mxu0 0.0
    %293 = vmatprep.subr.mxu0 0.0
    %294 = vmatpush1.msra.mxu0 0.0
    %295 = vmatprep.subr.mxu0 0.0
    %296 = vmatpush1.msra.mxu0 0.0
    %297 = vmatprep.subr.mxu0 0.0
    %298 = vmatpush1.msra.mxu0 0.0
    %299 = vmatprep.subr.mxu0 0.0
    %300 = vmatpush1.msra.mxu0 0.0
    %301 = vmatprep.subr.mxu0 0.0
    %302 = vmatpush1.msra.mxu0 0.0
    %303 = vmatprep.subr.mxu0 0.0
    %304 = vmatpush1.msra.mxu0 0.0
    %305 = vmatprep.subr.mxu0 0.0
    %306 = vmatpush1.msra.mxu0 0.0
    %307 = vmatprep.subr.mxu0 0.0
    %308 = vmatpush1.msra.mxu0 0.0
    %309 = vmatprep.subr.mxu0 0.0
    %310 = vmatpush1.msra.mxu0 0.0
    %311 = vmatprep.subr.mxu0 0.0
    %312 = vmatpush1.msra.mxu0 0.0
    %313 = vmatprep.subr.mxu0 0.0
    %314 = vmatpush1.msra.mxu0 0.0
    %315 = vmatprep.subr.mxu0 0.0
    %316 = vmatpush1.msra.mxu0 0.0
    %317 = vmatprep.mubr.f32.mxu0 0.0
    %318 = vmatmul.mubr.f32.gmra.mrb[0].mxu0 %v248
    %v319 = vpop.f32.mrb[0].mxu0
    %v320 = vadd.f32 %v246, %v319
    %v321 = vpop.f32.mrb[0].mxu0
    %322 = vmatprep.mubr.f32.mxu0 0.0
    %323 = vmatmul.mubr.f32.gmra.mrb[0].mxu0 %v251
    %v324 = vpop.f32.mrb[0].mxu0
    %v325 = vadd.f32 %v246, %v324
    %v326 = vpop.f32.mrb[0].mxu0
    %327 = vdwg.mxu0
    %v328 = vmax.f32 %v320, 0.0
    %v329 = vmax.f32 %v325, 0.0
    %v330 = vsel %vm57, %v328, 0.0
    %v331 = vrot.slane %v330, 4
    %v332 = vadd.f32 %v330, %v331
    %v333 = vrot.slane %v332, 2
    %v334 = vadd.f32 %v332, %v333
    %v335 = vrot.slane %v334, 1
    %v336 = vadd.f32 %v334, %v335
    %v337 = vsel %vm57, %v329, 0.0
    %v338 = vrot.slane %v337, 4
    %v339 = vadd.f32 %v337, %v338
    %v340 = vrot.slane %v339, 2
    %v341 = vadd.f32 %v339, %v340
    %v342 = vrot.slane %v341, 1
    %v343 = vadd.f32 %v341, %v342
    %v344 = vrcp.pop 8.0
    %v345 = vmul.f32 %v336, %v344
    %v346 = vmul.f32 %v343, %v344
    %v347 = vld [vmem:[#allocation4 + $0xa0] sm:$0xff]
    %v348 = vld [vmem:[#allocation4 + $0xa8] sm:$0xff]
    %v349 = vld [vmem:[#allocation4 + $0xb0] sm:$0xff]
    %v350 = vld [vmem:[#allocation4 + $0xb8] sm:$0xff]
    %v351 = vld [vmem:[#allocation4 + $0xc0] sm:$0xff]
    %v352 = vld [vmem:[#allocation4 + $0xc8] sm:$0xff]
    %v353 = vld [vmem:[#allocation4 + $0xd0] sm:$0xff]
    %v354 = vld [vmem:[#allocation4 + $0xd8] sm:$0xff]
    %v355 = vld [vmem:[%s2 + $0x3] sm:$0x1]
    %v356 = vlaneseq
    %v357 = vshrl.u32 %v356, 7
    %v358 = vsub.s32 0, %v357
    %v359 = vrot.slane %v355, %v358
    %vm362 = vcmask 1041409
    %v363 = vsel %vm362, %v346, %v345
    %v364 = vsel %vm57, %v363, 0
    %366 = vmatprep.subr.mxu0 0.0
    %367 = vmatpush1.msra.mxu0 %v347
    %368 = vmatprep.subr.mxu0 0.0
    %369 = vmatpush1.msra.mxu0 %v348
    %370 = vmatprep.subr.mxu0 0.0
    %371 = vmatpush1.msra.mxu0 %v349
    %372 = vmatprep.subr.mxu0 0.0
    %373 = vmatpush1.msra.mxu0 %v350
    %374 = vmatprep.subr.mxu0 0.0
    %375 = vmatpush1.msra.mxu0 %v351
    %376 = vmatprep.subr.mxu0 0.0
    %377 = vmatpush1.msra.mxu0 %v352
    %378 = vmatprep.subr.mxu0 0.0
    %379 = vmatpush1.msra.mxu0 %v353
    %380 = vmatprep.subr.mxu0 0.0
    %381 = vmatpush1.msra.mxu0 %v354
    %382 = vmatprep.subr.mxu0 0.0
    %383 = vmatpush1.msra.mxu0 0.0
    %384 = vmatprep.subr.mxu0 0.0
    %385 = vmatpush1.msra.mxu0 0.0
    %386 = vmatprep.subr.mxu0 0.0
    %387 = vmatpush1.msra.mxu0 0.0
    %388 = vmatprep.subr.mxu0 0.0
    %389 = vmatpush1.msra.mxu0 0.0
    %390 = vmatprep.subr.mxu0 0.0
    %391 = vmatpush1.msra.mxu0 0.0
    %392 = vmatprep.subr.mxu0 0.0
    %393 = vmatpush1.msra.mxu0 0.0
    %394 = vmatprep.subr.mxu0 0.0
    %395 = vmatpush1.msra.mxu0 0.0
    %396 = vmatprep.subr.mxu0 0.0
    %397 = vmatpush1.msra.mxu0 0.0
    %398 = vmatprep.subr.mxu0 0.0
    %399 = vmatpush1.msra.mxu0 0.0
    %400 = vmatprep.subr.mxu0 0.0
    %401 = vmatpush1.msra.mxu0 0.0
    %402 = vmatprep.subr.mxu0 0.0
    %403 = vmatpush1.msra.mxu0 0.0
    %404 = vmatprep.subr.mxu0 0.0
    %405 = vmatpush1.msra.mxu0 0.0
    %406 = vmatprep.subr.mxu0 0.0
    %407 = vmatpush1.msra.mxu0 0.0
    %408 = vmatprep.subr.mxu0 0.0
    %409 = vmatpush1.msra.mxu0 0.0
    %410 = vmatprep.subr.mxu0 0.0
    %411 = vmatpush1.msra.mxu0 0.0
    %412 = vmatprep.subr.mxu0 0.0
    %413 = vmatpush1.msra.mxu0 0.0
    %414 = vmatprep.subr.mxu0 0.0
    %415 = vmatpush1.msra.mxu0 0.0
    %416 = vmatprep.subr.mxu0 0.0
    %417 = vmatpush1.msra.mxu0 0.0
    %418 = vmatprep.subr.mxu0 0.0
    %419 = vmatpush1.msra.mxu0 0.0
    %420 = vmatprep.subr.mxu0 0.0
    %421 = vmatpush1.msra.mxu0 0.0
    %422 = vmatprep.subr.mxu0 0.0
    %423 = vmatpush1.msra.mxu0 0.0
    %424 = vmatprep.subr.mxu0 0.0
    %425 = vmatpush1.msra.mxu0 0.0
    %426 = vmatprep.subr.mxu0 0.0
    %427 = vmatpush1.msra.mxu0 0.0
    %428 = vmatprep.subr.mxu0 0.0
    %429 = vmatpush1.msra.mxu0 0.0
    %430 = vmatprep.mubr.f32.mxu0 0.0
    %431 = vmatmul.mubr.f32.gmra.mrb[0].mxu0 %v364
    %v432 = vpop.f32.mrb[0].mxu0
    %v433 = vadd.f32 %v359, %v432
    %v434 = vpop.f32.mrb[0].mxu0
    %435 = vdwg.mxu0
    %v436 = vmax.f32 %v433, 0.0
    %v437 = vld [vmem:[#allocation4 + $0xe0] sm:$0xff]
    %v438 = vld [vmem:[#allocation4 + $0xe8] sm:$0xff]
    %v439 = vld [vmem:[#allocation4 + $0xf0] sm:$0xff]
    %v440 = vld [vmem:[#allocation4 + $0xf8] sm:$0xff]
    %v441 = vld [vmem:[#allocation4 + $0x100] sm:$0xff]
    %v442 = vld [vmem:[#allocation4 + $0x108] sm:$0xff]
    %v443 = vld [vmem:[#allocation4 + $0x110] sm:$0xff]
    %v444 = vld [vmem:[#allocation4 + $0x118] sm:$0xff]
    %v445 = vld [vmem:[%s2 + $0x4] sm:$0x1]
    %v446 = vlaneseq
    %v447 = vshrl.u32 %v446, 7
    %v448 = vsub.s32 0, %v447
    %v449 = vrot.slane %v445, %v448
    %v451 = vsel %vm57, %v436, 0
    %453 = vmatprep.subr.mxu0 0.0
    %454 = vmatpush1.msra.mxu0 %v437
    %455 = vmatprep.subr.mxu0 0.0
    %456 = vmatpush1.msra.mxu0 %v438
    %457 = vmatprep.subr.mxu0 0.0
    %458 = vmatpush1.msra.mxu0 %v439
    %459 = vmatprep.subr.mxu0 0.0
    %460 = vmatpush1.msra.mxu0 %v440
    %461 = vmatprep.subr.mxu0 0.0
    %462 = vmatpush1.msra.mxu0 %v441
    %463 = vmatprep.subr.mxu0 0.0
    %464 = vmatpush1.msra.mxu0 %v442
    %465 = vmatprep.subr.mxu0 0.0
    %466 = vmatpush1.msra.mxu0 %v443
    %467 = vmatprep.subr.mxu0 0.0
    %468 = vmatpush1.msra.mxu0 %v444
    %469 = vmatprep.subr.mxu0 0.0
    %470 = vmatpush1.msra.mxu0 0.0
    %471 = vmatprep.subr.mxu0 0.0
    %472 = vmatpush1.msra.mxu0 0.0
    %473 = vmatprep.subr.mxu0 0.0
    %474 = vmatpush1.msra.mxu0 0.0
    %475 = vmatprep.subr.mxu0 0.0
    %476 = vmatpush1.msra.mxu0 0.0
    %477 = vmatprep.subr.mxu0 0.0
    %478 = vmatpush1.msra.mxu0 0.0
    %479 = vmatprep.subr.mxu0 0.0
    %480 = vmatpush1.msra.mxu0 0.0
    %481 = vmatprep.subr.mxu0 0.0
    %482 = vmatpush1.msra.mxu0 0.0
    %483 = vmatprep.subr.mxu0 0.0
    %484 = vmatpush1.msra.mxu0 0.0
    %485 = vmatprep.subr.mxu0 0.0
    %486 = vmatpush1.msra.mxu0 0.0
    %487 = vmatprep.subr.mxu0 0.0
    %488 = vmatpush1.msra.mxu0 0.0
    %489 = vmatprep.subr.mxu0 0.0
    %490 = vmatpush1.msra.mxu0 0.0
    %491 = vmatprep.subr.mxu0 0.0
    %492 = vmatpush1.msra.mxu0 0.0
    %493 = vmatprep.subr.mxu0 0.0
    %494 = vmatpush1.msra.mxu0 0.0
    %495 = vmatprep.subr.mxu0 0.0
    %496 = vmatpush1.msra.mxu0 0.0
    %497 = vmatprep.subr.mxu0 0.0
    %498 = vmatpush1.msra.mxu0 0.0
    %499 = vmatprep.subr.mxu0 0.0
    %500 = vmatpush1.msra.mxu0 0.0
    %501 = vmatprep.subr.mxu0 0.0
    %502 = vmatpush1.msra.mxu0 0.0
    %503 = vmatprep.subr.mxu0 0.0
    %504 = vmatpush1.msra.mxu0 0.0
    %505 = vmatprep.subr.mxu0 0.0
    %506 = vmatpush1.msra.mxu0 0.0
    %507 = vmatprep.subr.mxu0 0.0
    %508 = vmatpush1.msra.mxu0 0.0
    %509 = vmatprep.subr.mxu0 0.0
    %510 = vmatpush1.msra.mxu0 0.0
    %511 = vmatprep.subr.mxu0 0.0
    %512 = vmatpush1.msra.mxu0 0.0
    %513 = vmatprep.subr.mxu0 0.0
    %514 = vmatpush1.msra.mxu0 0.0
    %515 = vmatprep.subr.mxu0 0.0
    %516 = vmatpush1.msra.mxu0 0.0
    %517 = vmatprep.mubr.f32.mxu0 0.0
    %518 = vmatmul.mubr.f32.gmra.mrb[0].mxu0 %v451
    %v519 = vpop.f32.mrb[0].mxu0
    %v520 = vadd.f32 %v449, %v519
    %v521 = vpop.f32.mrb[0].mxu0
    %522 = vdwg.mxu0
    %v525 = vunpack.c.l.s4 1966171168
    %v526 = vunpack.c.0.s8 %v525
    %v527 = vlaneseq
    %v528 = vshrl.u32 %v527, 7
    %v529 = vsub.s32 %v526, %v528
    %v530 = vrot.slane %v520, %v529
    %v531 = vcombine.high %v530, %v530
    %v533 = vunpack.c.l.s4 1966171168
    %v534 = vunpack.c.0.s8 %v533
    %v535 = vlaneseq
    %v536 = vshrl.u32 %v535, 7
    %v537 = vsub.s32 %v534, %v536
    %v538 = vrot.slane %v530, %v537
    %v540 = vunpack.c.l.s4 1966171168
    %v541 = vunpack.c.0.s8 %v540
    %v542 = vlaneseq
    %v543 = vshrl.u32 %v542, 7
    %v544 = vsub.s32 %v541, %v543
    %v545 = vrot.slane %v531, %v544
    %v546 = vlaneseq
    %v547 = vshrl.u32 %v546, 7
    %v548 = vsub.s32 0, %v547
    %v549 = vrot.slane %v538, %v548
    %v550 = vlaneseq
    %v551 = vshrl.u32 %v550, 7
    %v552 = vsub.s32 0, %v551
    %v553 = vrot.slane %v545, %v552
    %554 = vrot.lane.b32.xlu0 %v549, 64
    %v555 = vpop.permute.xlu0 %554
    %556 = vrot.lane.b32.xlu0 %v553, 64
    %v557 = vpop.permute.xlu0 %556
    %v560 = vadd.f32 %v217, %v555
    %v561 = vadd.f32 %v222, %v557
    %v562 = vld [vmem:[%s2 + $0x5] sm:$0x1]
    %v563 = vlaneseq
    %v564 = vshrl.u32 %v563, 7
    %v565 = vsub.s32 0, %v564
    %v566 = vrot.slane %v562, %v565
    %568 = vrot.lane.b32.xlu0 %v566, 64
    %v569 = vpop.permute.xlu0 %568
    %v571 = vadd.f32 %v560, %v569
    %v572 = vadd.f32 %v561, %v569
    %v573 = vmax.f32 %v571, 0.0
    %v574 = vmax.f32 %v572, 0.0
    %v575 = vld [vmem:[#allocation4 + $0x120] sm:$0xff]
    %v576 = vld [vmem:[#allocation4 + $0x128] sm:$0xff]
    %v577 = vld [vmem:[#allocation4 + $0x130] sm:$0xff]
    %v578 = vld [vmem:[#allocation4 + $0x138] sm:$0xff]
    %v579 = vld [vmem:[%s2 + $0x6] sm:$0x1]
    %v580 = vlaneseq
    %v581 = vshrl.u32 %v580, 7
    %v582 = vsub.s32 0, %v581
    %v583 = vrot.slane %v579, %v582
    %586 = vrot.lane.b32.xlu0 %v573, 64
    %v587 = vpop.permute.xlu0 %586
    %588 = vrot.lane.b32.xlu0 %v574, 64
    %v589 = vpop.permute.xlu0 %588
    %v590 = vsel %vm143, %v587, 0
    %v592 = vsel %vm143, %v589, 0
    %594 = vmatprep.subr.mxu0 0.0
    %595 = vmatpush1.msra.mxu0 %v575
    %596 = vmatprep.subr.mxu0 0.0
    %597 = vmatpush1.msra.mxu0 %v576
    %598 = vmatprep.subr.mxu0 0.0
    %599 = vmatpush1.msra.mxu0 %v577
    %600 = vmatprep.subr.mxu0 0.0
    %601 = vmatpush1.msra.mxu0 %v578
    %602 = vmatprep.subr.mxu0 0.0
    %603 = vmatpush1.msra.mxu0 0.0
    %604 = vmatprep.subr.mxu0 0.0
    %605 = vmatpush1.msra.mxu0 0.0
    %606 = vmatprep.subr.mxu0 0.0
    %607 = vmatpush1.msra.mxu0 0.0
    %608 = vmatprep.subr.mxu0 0.0
    %609 = vmatpush1.msra.mxu0 0.0
    %610 = vmatprep.subr.mxu0 0.0
    %611 = vmatpush1.msra.mxu0 0.0
    %612 = vmatprep.subr.mxu0 0.0
    %613 = vmatpush1.msra.mxu0 0.0
    %614 = vmatprep.subr.mxu0 0.0
    %615 = vmatpush1.msra.mxu0 0.0
    %616 = vmatprep.subr.mxu0 0.0
    %617 = vmatpush1.msra.mxu0 0.0
    %618 = vmatprep.subr.mxu0 0.0
    %619 = vmatpush1.msra.mxu0 0.0
    %620 = vmatprep.subr.mxu0 0.0
    %621 = vmatpush1.msra.mxu0 0.0
    %622 = vmatprep.subr.mxu0 0.0
    %623 = vmatpush1.msra.mxu0 0.0
    %624 = vmatprep.subr.mxu0 0.0
    %625 = vmatpush1.msra.mxu0 0.0
    %626 = vmatprep.subr.mxu0 0.0
    %627 = vmatpush1.msra.mxu0 0.0
    %628 = vmatprep.subr.mxu0 0.0
    %629 = vmatpush1.msra.mxu0 0.0
    %630 = vmatprep.subr.mxu0 0.0
    %631 = vmatpush1.msra.mxu0 0.0
    %632 = vmatprep.subr.mxu0 0.0
    %633 = vmatpush1.msra.mxu0 0.0
    %634 = vmatprep.subr.mxu0 0.0
    %635 = vmatpush1.msra.mxu0 0.0
    %636 = vmatprep.subr.mxu0 0.0
    %637 = vmatpush1.msra.mxu0 0.0
    %638 = vmatprep.subr.mxu0 0.0
    %639 = vmatpush1.msra.mxu0 0.0
    %640 = vmatprep.subr.mxu0 0.0
    %641 = vmatpush1.msra.mxu0 0.0
    %642 = vmatprep.subr.mxu0 0.0
    %643 = vmatpush1.msra.mxu0 0.0
    %644 = vmatprep.subr.mxu0 0.0
    %645 = vmatpush1.msra.mxu0 0.0
    %646 = vmatprep.subr.mxu0 0.0
    %647 = vmatpush1.msra.mxu0 0.0
    %648 = vmatprep.subr.mxu0 0.0
    %649 = vmatpush1.msra.mxu0 0.0
    %650 = vmatprep.subr.mxu0 0.0
    %651 = vmatpush1.msra.mxu0 0.0
    %652 = vmatprep.subr.mxu0 0.0
    %653 = vmatpush1.msra.mxu0 0.0
    %654 = vmatprep.subr.mxu0 0.0
    %655 = vmatpush1.msra.mxu0 0.0
    %656 = vmatprep.subr.mxu0 0.0
    %657 = vmatpush1.msra.mxu0 0.0
    %658 = vmatprep.mubr.f32.mxu0 0.0
    %659 = vmatmul.mubr.f32.gmra.mrb[0].mxu0 %v590
    %v660 = vpop.f32.mrb[0].mxu0
    %v661 = vadd.f32 %v583, %v660
    %v662 = vpop.f32.mrb[0].mxu0
    %663 = vmatprep.mubr.f32.mxu0 0.0
    %664 = vmatmul.mubr.f32.gmra.mrb[0].mxu0 %v592
    %v665 = vpop.f32.mrb[0].mxu0
    %v666 = vadd.f32 %v583, %v665
    %v667 = vpop.f32.mrb[0].mxu0
    %668 = vdwg.mxu0
    %669 = vst [vmem:[%s3] sm:$0xff] %v661
    %670 = vst [vmem:[%s3 + $0x8] sm:$0xff] %v666
    // Predicated region
    $region22: #{forward.1} parent=1 // pred_check
      _
    $region23: #{forward.1} parent=1 // pred_check_branch
      %672 = sbr.rel (0) target = $region25
    $region24: #{forward.1} parent=1 // pred_region
      _
    $region25: #{forward.1} parent=1 // pred_fallthru
      _
    // Predicated region
    $region26: #{forward.1} parent=1 // pred_check
      _
    $region27: #{forward.1} parent=1 // pred_check_branch
      %674 = sbr.rel (0) target = $region29
    $region28: #{forward.1} parent=1 // pred_region
      _
    $region29: #{forward.1} parent=1 // pred_fallthru
      _
    %675 = vsyncpa [#allocation3], 1
    %676 = vsyncpa [#allocation5], 1

</llo_original>
